<compile_context>
chip_gen: v5e
topology: v5e:2x2
jax: 0.10.0
libtpu: 0.0.40
codegen_flags: <defaults>
</compile_context>

<pallas_src>
import functools

import jax
import jax.numpy as jnp
from jax.experimental import pallas as pl


# ------------------------------- Pallas kernel -------------------------------
def _distilling_kernel(B, L, L_out,
                       x_ref, w0_ref, w1_ref, w2_ref, b_ref, o_ref):
    x = x_ref[...]                                        # (B, L, C) f32
    C = x.shape[-1]

    # Circular shifts along the length axis (independently per batch).
    x_prev = jnp.concatenate([x[:, L - 1:L, :], x[:, :L - 1, :]], axis=1)
    x_next = jnp.concatenate([x[:, 1:L, :], x[:, 0:1, :]], axis=1)

    # k=3 circular Conv1d with BatchNorm pre-folded, as three channel matmuls
    # on the flattened (B*L, C) token axis.  Weights are already (C_in, C_out).
    xf = x.reshape(B * L, C)
    xpf = x_prev.reshape(B * L, C)
    xnf = x_next.reshape(B * L, C)
    h = (jnp.dot(xpf, w0_ref[...], preferred_element_type=jnp.float32)
         + jnp.dot(xf, w1_ref[...], preferred_element_type=jnp.float32)
         + jnp.dot(xnf, w2_ref[...], preferred_element_type=jnp.float32)
         + b_ref[...])                                    # (B*L, C); bias (1, C)

    # ELU (alpha = 1).
    act = jnp.where(h > 0, h, jnp.exp(jnp.minimum(h, 0.0)) - 1.0)
    act = act.reshape(B, L, C)

    # MaxPool1d(kernel=3, stride=2, padding=1) along L:
    # output row t covers original rows {2t-1, 2t, 2t+1}; out-of-range rows are
    # the -inf padding, i.e. simply dropped.  Built from single-sublane slices
    # and elementwise max (no cross-lane reductions needed).
    rows = []
    for t in range(L_out):
        idxs = [i for i in (2 * t - 1, 2 * t, 2 * t + 1) if 0 <= i < L]
        m = act[:, idxs[0]:idxs[0] + 1, :]
        for i in idxs[1:]:
            m = jnp.maximum(m, act[:, i:i + 1, :])
        rows.append(m)
    o_ref[...] = jnp.concatenate(rows, axis=1)            # (B, L_out, C)


# ---------------------------------- wrapper ----------------------------------
def distilling_layer(x, params, *, eps=1e-5):
    """x: (B, L, C) float32. Returns (B, L_out, C) float32."""
    B, L, C = x.shape
    L_out = (L + 2 - 3) // 2 + 1                          # MaxPool1d(3, 2, pad=1)

    # Fold inference BatchNorm into the conv weights/bias (exact):
    #   BN(conv(x)) = (scale ⊙ W) x + (scale * b + shift)
    scale = params["bn_gamma"] * jax.lax.rsqrt(params["bn_var"] + eps)   # (C,)
    w = params["conv_w"] * scale[:, None, None]                          # (C, C, 3)
    b = scale * (params["conv_b"] - params["bn_mean"]) + params["bn_beta"]

    # Pre-transpose each tap so the kernel does plain x @ Wk (no in-kernel .T).
    w0 = jnp.transpose(w[:, :, 0])                        # (C_in, C_out)
    w1 = jnp.transpose(w[:, :, 1])
    w2 = jnp.transpose(w[:, :, 2])
    b2d = b[None, :]                                      # (1, C)

    kernel = functools.partial(_distilling_kernel, B, L, L_out)
    # Single invocation, no grid: whole arrays are copied to VMEM once.
    return pl.pallas_call(
        kernel,
        out_shape=jax.ShapeDtypeStruct((B, L_out, C), jnp.float32),
    )(x, w0, w1, w2, b2d)


# --------------------------- deterministic params ----------------------------
def init_params(key, channel):
    ks = jax.random.split(key, 6)
    conv_w = (jax.random.normal(ks[0], (channel, channel, 3), jnp.float32)
              / jnp.sqrt(3.0 * channel))
    conv_b = jax.random.normal(ks[1], (channel,), jnp.float32) * 0.02
    bn_gamma = 1.0 + 0.1 * jax.random.normal(ks[2], (channel,), jnp.float32)
    bn_beta = 0.1 * jax.random.normal(ks[3], (channel,), jnp.float32)
    bn_mean = 0.1 * jax.random.normal(ks[4], (channel,), jnp.float32)
    bn_var = 0.5 + jax.random.uniform(ks[5], (channel,), jnp.float32)
    return dict(conv_w=conv_w, conv_b=conv_b, bn_gamma=bn_gamma,
                bn_beta=bn_beta, bn_mean=bn_mean, bn_var=bn_var)


# --------------------------- pure-JAX reference ------------------------------
def reference(x, p, *, eps=1e-5):
    B, L, C = x.shape
    xc = jnp.transpose(x, (0, 2, 1))                                   # (B, C, L)
    xp = jnp.concatenate([xc[:, :, -1:], xc, xc[:, :, :1]], axis=-1)   # circular pad 1
    y = jnp.zeros((B, C, L), jnp.float32)
    for k in range(3):
        y = y + jnp.einsum("bil,oi->bol", xp[:, :, k:k + L], p["conv_w"][:, :, k])
    y = y + p["conv_b"][None, :, None]
    scale = p["bn_gamma"] / jnp.sqrt(p["bn_var"] + eps)
    y = (y - p["bn_mean"][None, :, None]) * scale[None, :, None] + p["bn_beta"][None, :, None]
    y = jnp.where(y > 0, y, jnp.exp(y) - 1.0)                          # ELU
    neg = jnp.full((B, C, 1), -jnp.inf, jnp.float32)
    ypad = jnp.concatenate([neg, y, neg], axis=-1)                     # pool pad
    L_out = (L + 2 - 3) // 2 + 1
    cols = [jnp.max(ypad[:, :, 2 * t:2 * t + 3], axis=-1, keepdims=True)
            for t in range(L_out)]
    out = jnp.concatenate(cols, axis=-1)                               # (B, C, L_out)
    return jnp.transpose(out, (0, 2, 1))                               # (B, L_out, C)


# ------------------------------------ main ------------------------------------
if __name__ == "__main__":
    B, L, C = 2, 8, 32

    key = jax.random.PRNGKey(0)
    kx, kp = jax.random.split(key)
    x = jax.random.normal(kx, (B, L, C), jnp.float32)
    params = init_params(kp, C)

    out = distilling_layer(x, params)
    out = jax.block_until_ready(out)

    ref = reference(x, params)
    assert out.shape == (B, (L - 1) // 2 + 1, C), out.shape
    assert jnp.allclose(out, ref, atol=1e-4, rtol=1e-4), "mismatch vs reference"

    print("KERNEL_OK")
</pallas_src>

<mosaic_0001>
module attributes {stable_mosaic.version = 11 : i64} {
  func.func @_distilling_kernel(%arg0: memref<2x8x32xf32, #tpu.memory_space<vmem>>, %arg1: memref<32x32xf32, #tpu.memory_space<vmem>>, %arg2: memref<32x32xf32, #tpu.memory_space<vmem>>, %arg3: memref<32x32xf32, #tpu.memory_space<vmem>>, %arg4: memref<1x32xf32, #tpu.memory_space<vmem>>, %arg5: memref<2x4x32xf32, #tpu.memory_space<vmem>>) attributes {dimension_semantics = [], scalar_prefetch = 0 : i64, scratch_operands = 0 : i64, tpu.core_type = #tpu.core_type<tc>} {
    %c0 = arith.constant 0 : index
    %c0_0 = arith.constant 0 : index
    %c0_1 = arith.constant 0 : index
    %0 = vector.load %arg0[%c0, %c0_0, %c0_1] : memref<2x8x32xf32, #tpu.memory_space<vmem>>, vector<2x8x32xf32>
    %1 = vector.extract_strided_slice %0 {offsets = [0, 7, 0], sizes = [2, 1, 32], strides = [1, 1, 1]} : vector<2x8x32xf32> to vector<2x1x32xf32>
    %2 = vector.extract_strided_slice %0 {offsets = [0, 0, 0], sizes = [2, 7, 32], strides = [1, 1, 1]} : vector<2x8x32xf32> to vector<2x7x32xf32>
    %3 = tpu.concatenate %1, %2 in 1 : vector<2x1x32xf32>, vector<2x7x32xf32> -> vector<2x8x32xf32>
    %4 = vector.extract_strided_slice %0 {offsets = [0, 1, 0], sizes = [2, 7, 32], strides = [1, 1, 1]} : vector<2x8x32xf32> to vector<2x7x32xf32>
    %5 = vector.extract_strided_slice %0 {offsets = [0, 0, 0], sizes = [2, 1, 32], strides = [1, 1, 1]} : vector<2x8x32xf32> to vector<2x1x32xf32>
    %6 = tpu.concatenate %4, %5 in 1 : vector<2x7x32xf32>, vector<2x1x32xf32> -> vector<2x8x32xf32>
    %7 = vector.shape_cast %0 : vector<2x8x32xf32> to vector<16x32xf32>
    %8 = vector.shape_cast %3 : vector<2x8x32xf32> to vector<16x32xf32>
    %9 = vector.shape_cast %6 : vector<2x8x32xf32> to vector<16x32xf32>
    %c0_2 = arith.constant 0 : index
    %c0_3 = arith.constant 0 : index
    %10 = vector.load %arg1[%c0_2, %c0_3] : memref<32x32xf32, #tpu.memory_space<vmem>>, vector<32x32xf32>
    %cst = arith.constant dense<0.000000e+00> : vector<16x32xf32>
    %11 = tpu.matmul %8, %10, %cst {dimension_numbers = #tpu.dot_dimension_numbers<[1], [0], [0], [1], [0, 0, 1, 1], [], []>} : vector<16x32xf32>, vector<32x32xf32>, vector<16x32xf32> -> vector<16x32xf32>
    %c0_4 = arith.constant 0 : index
    %c0_5 = arith.constant 0 : index
    %12 = vector.load %arg2[%c0_4, %c0_5] : memref<32x32xf32, #tpu.memory_space<vmem>>, vector<32x32xf32>
    %cst_6 = arith.constant dense<0.000000e+00> : vector<16x32xf32>
    %13 = tpu.matmul %7, %12, %cst_6 {dimension_numbers = #tpu.dot_dimension_numbers<[1], [0], [0], [1], [0, 0, 1, 1], [], []>} : vector<16x32xf32>, vector<32x32xf32>, vector<16x32xf32> -> vector<16x32xf32>
    %14 = arith.addf %11, %13 : vector<16x32xf32>
    %c0_7 = arith.constant 0 : index
    %c0_8 = arith.constant 0 : index
    %15 = vector.load %arg3[%c0_7, %c0_8] : memref<32x32xf32, #tpu.memory_space<vmem>>, vector<32x32xf32>
    %cst_9 = arith.constant dense<0.000000e+00> : vector<16x32xf32>
    %16 = tpu.matmul %9, %15, %cst_9 {dimension_numbers = #tpu.dot_dimension_numbers<[1], [0], [0], [1], [0, 0, 1, 1], [], []>} : vector<16x32xf32>, vector<32x32xf32>, vector<16x32xf32> -> vector<16x32xf32>
    %17 = arith.addf %14, %16 : vector<16x32xf32>
    %c0_10 = arith.constant 0 : index
    %c0_11 = arith.constant 0 : index
    %18 = vector.load %arg4[%c0_10, %c0_11] : memref<1x32xf32, #tpu.memory_space<vmem>>, vector<1x32xf32>
    %19 = vector.broadcast %18 : vector<1x32xf32> to vector<16x32xf32>
    %20 = arith.addf %17, %19 : vector<16x32xf32>
    %cst_12 = arith.constant 0.000000e+00 : f32
    %21 = vector.broadcast %cst_12 : f32 to vector<16x32xf32>
    %22 = arith.cmpf ogt, %20, %21 : vector<16x32xf32>
    %cst_13 = arith.constant 0.000000e+00 : f32
    %23 = vector.broadcast %cst_13 : f32 to vector<16x32xf32>
    %24 = arith.minimumf %20, %23 : vector<16x32xf32>
    %25 = math.exp %24 : vector<16x32xf32>
    %cst_14 = arith.constant 1.000000e+00 : f32
    %26 = vector.broadcast %cst_14 : f32 to vector<16x32xf32>
    %27 = arith.subf %25, %26 : vector<16x32xf32>
    %28 = arith.select %22, %20, %27 : vector<16x32xi1>, vector<16x32xf32>
    %29 = vector.shape_cast %28 : vector<16x32xf32> to vector<2x8x32xf32>
    %30 = vector.extract_strided_slice %29 {offsets = [0, 0, 0], sizes = [2, 1, 32], strides = [1, 1, 1]} : vector<2x8x32xf32> to vector<2x1x32xf32>
    %31 = vector.extract_strided_slice %29 {offsets = [0, 1, 0], sizes = [2, 1, 32], strides = [1, 1, 1]} : vector<2x8x32xf32> to vector<2x1x32xf32>
    %32 = arith.maximumf %30, %31 : vector<2x1x32xf32>
    %33 = vector.extract_strided_slice %29 {offsets = [0, 1, 0], sizes = [2, 1, 32], strides = [1, 1, 1]} : vector<2x8x32xf32> to vector<2x1x32xf32>
    %34 = vector.extract_strided_slice %29 {offsets = [0, 2, 0], sizes = [2, 1, 32], strides = [1, 1, 1]} : vector<2x8x32xf32> to vector<2x1x32xf32>
    %35 = arith.maximumf %33, %34 : vector<2x1x32xf32>
    %36 = vector.extract_strided_slice %29 {offsets = [0, 3, 0], sizes = [2, 1, 32], strides = [1, 1, 1]} : vector<2x8x32xf32> to vector<2x1x32xf32>
    %37 = arith.maximumf %35, %36 : vector<2x1x32xf32>
    %38 = vector.extract_strided_slice %29 {offsets = [0, 3, 0], sizes = [2, 1, 32], strides = [1, 1, 1]} : vector<2x8x32xf32> to vector<2x1x32xf32>
    %39 = vector.extract_strided_slice %29 {offsets = [0, 4, 0], sizes = [2, 1, 32], strides = [1, 1, 1]} : vector<2x8x32xf32> to vector<2x1x32xf32>
    %40 = arith.maximumf %38, %39 : vector<2x1x32xf32>
    %41 = vector.extract_strided_slice %29 {offsets = [0, 5, 0], sizes = [2, 1, 32], strides = [1, 1, 1]} : vector<2x8x32xf32> to vector<2x1x32xf32>
    %42 = arith.maximumf %40, %41 : vector<2x1x32xf32>
    %43 = vector.extract_strided_slice %29 {offsets = [0, 5, 0], sizes = [2, 1, 32], strides = [1, 1, 1]} : vector<2x8x32xf32> to vector<2x1x32xf32>
    %44 = vector.extract_strided_slice %29 {offsets = [0, 6, 0], sizes = [2, 1, 32], strides = [1, 1, 1]} : vector<2x8x32xf32> to vector<2x1x32xf32>
    %45 = arith.maximumf %43, %44 : vector<2x1x32xf32>
    %46 = vector.extract_strided_slice %29 {offsets = [0, 7, 0], sizes = [2, 1, 32], strides = [1, 1, 1]} : vector<2x8x32xf32> to vector<2x1x32xf32>
    %47 = arith.maximumf %45, %46 : vector<2x1x32xf32>
    %48 = tpu.concatenate %32, %37, %42, %47 in 1 : vector<2x1x32xf32>, vector<2x1x32xf32>, vector<2x1x32xf32>, vector<2x1x32xf32> -> vector<2x4x32xf32>
    %c0_15 = arith.constant 0 : index
    %c0_16 = arith.constant 0 : index
    %c0_17 = arith.constant 0 : index
    %49 = vector.load %arg5[%c0_15, %c0_16, %c0_17] : memref<2x4x32xf32, #tpu.memory_space<vmem>>, vector<2x4x32xf32>
    tpu.vector_store %arg5[%c0_15, %c0_16, %c0_17], %48 {strides = array<i32>} : memref<2x4x32xf32, #tpu.memory_space<vmem>>, vector<2x4x32xf32>,
    return
  }
}

</mosaic_0001>

<llo_original>
// kernel: tpu_custom_call.1
$region0: #{tpu_custom_call.1}
  #allocation0 [shape = 'u32[]', space=smem, size = 0x4, offset = 0x4, fixed_abs, tag = 'smem constant byte address 0x4 - core index']
  #allocation1 [shape = 'u32[72,128]{1,0:T(1,128)}', space=vmem, size = 0x9000, scoped, tag = 'internal scratch']
  %s0 = inlined_call_operand.hbm [shape: f32[2,8,32], index: 0, kind: input, shape index: {}]
  %s1 = inlined_call_operand.hbm [shape: f32[32,32], index: 1, kind: input, shape index: {}]
  %s2 = inlined_call_operand.hbm [shape: f32[32,32], index: 2, kind: input, shape index: {}]
  %s3 = inlined_call_operand.hbm [shape: f32[32,32], index: 3, kind: input, shape index: {}]
  %s4 = inlined_call_operand.vmem [shape: f32[1,32], index: 4, kind: input, shape index: {}]
  %s5 = inlined_call_operand.hbm [shape: f32[2,4,32], index: 5, kind: output, shape index: {}]
  %s6 = sld [smem:[#allocation0]]
  $region46: #{tpu_custom_call.1} parent=0
    _
  %s8 = ssub.s32 1, %s6
  %s9 = scalar_select 0, %s8, %s6
  $region1: #{tpu_custom_call.1} parent=0
    #allocation2 [shape = 'u8[8192]{0}', space=vmem, size = 0x2000, scoped, tag = 'input window, operand 0, single buffered']
    #allocation3 [shape = 's32[1]{0}', space=sflag, size = 0x4, scoped, tag = 'scoped memory for tpu_custom_call.1']
    #allocation4 [shape = 's32[1]{0}', space=sflag, size = 0x4, scoped, tag = 'scoped memory for tpu_custom_call.1']
    #allocation5 [shape = 'u8[16384]{0}', space=vmem, size = 0x4000, scoped, tag = 'input window, operand 1, single buffered']
    #allocation6 [shape = 's32[1]{0}', space=sflag, size = 0x4, scoped, tag = 'scoped memory for tpu_custom_call.1']
    #allocation7 [shape = 'u8[16384]{0}', space=vmem, size = 0x4000, scoped, tag = 'input window, operand 2, single buffered']
    #allocation8 [shape = 'u8[16384]{0}', space=vmem, size = 0x4000, scoped, tag = 'input window, operand 3, single buffered']
    #allocation9 [shape = 's32[1]{0}', space=sflag, size = 0x4, scoped, tag = 'scoped memory for tpu_custom_call.1']
    #allocation10 [shape = 'u8[4096]{0}', space=vmem, size = 0x1000, scoped, tag = 'output window, operand 0, single buffered']
    %10 = vsyncpa [#allocation3], 0
    %11 = vsyncpa [#allocation6], 0
    %12 = vsyncpa [#allocation9], 0
    %13 = vsyncpa [#allocation4], 0
    // Predicated region
    $region2: #{tpu_custom_call.1} parent=1 // pred_check
      _
    $region3: #{tpu_custom_call.1} parent=1 // pred_check_branch
      %15 = sbr.rel (0) target = $region5
    $region4: #{tpu_custom_call.1} parent=1 // pred_region
      %17 = vsyncadd [#allocation3], 0
      %s18 = sshll.u32 %s0, 4
      %s19 = int_to_ptr.hbm [resolvable:$true] %s18
      %s20 = sshll.u32 [#allocation2], 4
      %s21 = int_to_ptr.vmem [resolvable:$true] %s20
      %26 = dma.hbm_to_vmem [thread:$0]  %s19, 256, %s21, [#allocation3], 128, 128, 8
    $region5: #{tpu_custom_call.1} parent=1 // pred_fallthru
      _
    // Predicated region
    $region6: #{tpu_custom_call.1} parent=1 // pred_check
      _
    $region7: #{tpu_custom_call.1} parent=1 // pred_check_branch
      %28 = sbr.rel (0) target = $region9
    $region8: #{tpu_custom_call.1} parent=1 // pred_region
      %30 = vsyncadd [#allocation6], 0
      %s31 = sshll.u32 %s1, 4
      %s32 = int_to_ptr.hbm [resolvable:$true] %s31
      %s33 = sshll.u32 [#allocation5], 4
      %s34 = int_to_ptr.vmem [resolvable:$true] %s33
      %39 = dma.hbm_to_vmem [thread:$0]  %s32, 512, %s34, [#allocation6], 128, 128, 8
    $region9: #{tpu_custom_call.1} parent=1 // pred_fallthru
      _
    // Predicated region
    $region10: #{tpu_custom_call.1} parent=1 // pred_check
      _
    $region11: #{tpu_custom_call.1} parent=1 // pred_check_branch
      %41 = sbr.rel (0) target = $region13
    $region12: #{tpu_custom_call.1} parent=1 // pred_region
      %43 = vsyncadd [#allocation6], 0
      %s44 = sshll.u32 %s2, 4
      %s45 = int_to_ptr.hbm [resolvable:$true] %s44
      %s46 = sshll.u32 [#allocation7], 4
      %s47 = int_to_ptr.vmem [resolvable:$true] %s46
      %52 = dma.hbm_to_vmem [thread:$0]  %s45, 512, %s47, [#allocation6], 128, 128, 8
    $region13: #{tpu_custom_call.1} parent=1 // pred_fallthru
      _
    // Predicated region
    $region14: #{tpu_custom_call.1} parent=1 // pred_check
      _
    $region15: #{tpu_custom_call.1} parent=1 // pred_check_branch
      %54 = sbr.rel (0) target = $region17
    $region16: #{tpu_custom_call.1} parent=1 // pred_region
      %56 = vsyncadd [#allocation9], 0
      %s57 = sshll.u32 %s3, 4
      %s58 = int_to_ptr.hbm [resolvable:$true] %s57
      %s59 = sshll.u32 [#allocation8], 4
      %s60 = int_to_ptr.vmem [resolvable:$true] %s59
      %65 = dma.hbm_to_vmem [thread:$0]  %s58, 512, %s60, [#allocation9], 128, 128, 8
    $region17: #{tpu_custom_call.1} parent=1 // pred_fallthru
      _
    // Predicated region
    $region18: #{tpu_custom_call.1} parent=1 // pred_check
      _
    $region19: #{tpu_custom_call.1} parent=1 // pred_check_branch
      %67 = sbr.rel (0) target = $region21
    $region20: #{tpu_custom_call.1} parent=1 // pred_region
      _
    $region21: #{tpu_custom_call.1} parent=1 // pred_fallthru
      _
    // Predicated region
    $region22: #{tpu_custom_call.1} parent=1 // pred_check
      _
    $region23: #{tpu_custom_call.1} parent=1 // pred_check_branch
      %69 = sbr.rel (0) target = $region25
    $region24: #{tpu_custom_call.1} parent=1 // pred_region
      %71 = dma.done [#allocation3], 256
    $region25: #{tpu_custom_call.1} parent=1 // pred_fallthru
      _
    // Predicated region
    $region26: #{tpu_custom_call.1} parent=1 // pred_check
      _
    $region27: #{tpu_custom_call.1} parent=1 // pred_check_branch
      %73 = sbr.rel (0) target = $region29
    $region28: #{tpu_custom_call.1} parent=1 // pred_region
      %75 = dma.done [#allocation6], 512
    $region29: #{tpu_custom_call.1} parent=1 // pred_fallthru
      _
    // Predicated region
    $region30: #{tpu_custom_call.1} parent=1 // pred_check
      _
    $region31: #{tpu_custom_call.1} parent=1 // pred_check_branch
      %77 = sbr.rel (0) target = $region33
    $region32: #{tpu_custom_call.1} parent=1 // pred_region
      %79 = dma.done [#allocation6], 512
    $region33: #{tpu_custom_call.1} parent=1 // pred_fallthru
      _
    // Predicated region
    $region34: #{tpu_custom_call.1} parent=1 // pred_check
      _
    $region35: #{tpu_custom_call.1} parent=1 // pred_check_branch
      %81 = sbr.rel (0) target = $region37
    $region36: #{tpu_custom_call.1} parent=1 // pred_region
      %83 = dma.done [#allocation9], 512
    $region37: #{tpu_custom_call.1} parent=1 // pred_fallthru
      _
    %v84 = vld [vmem:[#allocation2] sm:$0xff]
    %v85 = vld [vmem:[#allocation2 + $0x8] sm:$0xff]
    %v88 = vrot.slane %v84, 7
    %v89 = vrot.slane %v85, 7
    %vm92 = vcmask 1040384
    %v93 = vsel %vm92, %v88, %v88
    %v94 = vsel %vm92, %v89, %v89
    %v95 = vrot.slane %v84, 1
    %v96 = vrot.slane %v85, 1
    %vm99 = vcmask 1046528
    %v100 = vsel %vm99, %v95, %v95
    %v101 = vsel %vm99, %v96, %v96
    %v102 = vld [vmem:[#allocation5] sm:$0xff]
    %v103 = vld [vmem:[#allocation5 + $0x8] sm:$0xff]
    %v104 = vld [vmem:[#allocation5 + $0x10] sm:$0xff]
    %v105 = vld [vmem:[#allocation5 + $0x18] sm:$0xff]
    %v106 = vld [vmem:[#allocation7] sm:$0xff]
    %v107 = vld [vmem:[#allocation7 + $0x8] sm:$0xff]
    %v108 = vld [vmem:[#allocation7 + $0x10] sm:$0xff]
    %v109 = vld [vmem:[#allocation7 + $0x18] sm:$0xff]
    %vm110 = vcmask 261120
    %v111 = vsel %vm110, %v84, 0
    %v113 = vsel %vm110, %v85, 0
    %115 = vmatpush.msra.mxu0 0.0
    %116 = vmatpush.msra.mxu0 0.0
    %117 = vmatpush.msra.mxu0 0.0
    %118 = vmatpush.msra.mxu0 0.0
    %119 = vmatpush.msra.mxu0 0.0
    %120 = vmatpush.msra.mxu0 0.0
    %121 = vmatpush.msra.mxu0 0.0
    %122 = vmatpush.msra.mxu0 0.0
    %123 = vmatpush.msra.mxu0 0.0
    %124 = vmatpush.msra.mxu0 0.0
    %125 = vmatpush.msra.mxu0 0.0
    %126 = vmatpush.msra.mxu0 0.0
    %127 = vmatpush.msra.mxu0 %v109
    %128 = vmatpush.msra.mxu0 %v108
    %129 = vmatpush.msra.mxu0 %v107
    %130 = vmatpush.msra.mxu0 %v106
    %131 = vmatmul.f32.gmra.mxu0 %v111
    %v132 = vpop.f32.mrf.mxu0
    %v133 = vadd.f32 0.0, %v132
    %134 = vmatmul.f32.gmra.mxu0 %v113
    %v135 = vpop.f32.mrf.mxu0
    %v136 = vadd.f32 0.0, %v135
    %137 = vdwg.mxu0
    %v139 = vsel %vm110, %v93, 0
    %v142 = vsel %vm110, %v94, 0
    %144 = vmatpush.msra.mxu0 0.0
    %145 = vmatpush.msra.mxu0 0.0
    %146 = vmatpush.msra.mxu0 0.0
    %147 = vmatpush.msra.mxu0 0.0
    %148 = vmatpush.msra.mxu0 0.0
    %149 = vmatpush.msra.mxu0 0.0
    %150 = vmatpush.msra.mxu0 0.0
    %151 = vmatpush.msra.mxu0 0.0
    %152 = vmatpush.msra.mxu0 0.0
    %153 = vmatpush.msra.mxu0 0.0
    %154 = vmatpush.msra.mxu0 0.0
    %155 = vmatpush.msra.mxu0 0.0
    %156 = vmatpush.msra.mxu0 %v105
    %157 = vmatpush.msra.mxu0 %v104
    %158 = vmatpush.msra.mxu0 %v103
    %159 = vmatpush.msra.mxu0 %v102
    %160 = vmatmul.f32.gmra.mxu0 %v139
    %v161 = vpop.f32.mrf.mxu0
    %v162 = vadd.f32 %v133, %v161
    %163 = vmatmul.f32.gmra.mxu0 %v142
    %v164 = vpop.f32.mrf.mxu0
    %v165 = vadd.f32 %v136, %v164
    %166 = vdwg.mxu0
    %v167 = vld [vmem:[#allocation8] sm:$0xff]
    %v168 = vld [vmem:[#allocation8 + $0x8] sm:$0xff]
    %v169 = vld [vmem:[#allocation8 + $0x10] sm:$0xff]
    %v170 = vld [vmem:[#allocation8 + $0x18] sm:$0xff]
    %v172 = vsel %vm110, %v100, 0
    %v175 = vsel %vm110, %v101, 0
    %177 = vmatpush.msra.mxu0 0.0
    %178 = vmatpush.msra.mxu0 0.0
    %179 = vmatpush.msra.mxu0 0.0
    %180 = vmatpush.msra.mxu0 0.0
    %181 = vmatpush.msra.mxu0 0.0
    %182 = vmatpush.msra.mxu0 0.0
    %183 = vmatpush.msra.mxu0 0.0
    %184 = vmatpush.msra.mxu0 0.0
    %185 = vmatpush.msra.mxu0 0.0
    %186 = vmatpush.msra.mxu0 0.0
    %187 = vmatpush.msra.mxu0 0.0
    %188 = vmatpush.msra.mxu0 0.0
    %189 = vmatpush.msra.mxu0 %v170
    %190 = vmatpush.msra.mxu0 %v169
    %191 = vmatpush.msra.mxu0 %v168
    %192 = vmatpush.msra.mxu0 %v167
    %193 = vmatmul.f32.gmra.mxu0 %v172
    %v194 = vpop.f32.mrf.mxu0
    %v195 = vadd.f32 0.0, %v194
    %196 = vmatmul.f32.gmra.mxu0 %v175
    %v197 = vpop.f32.mrf.mxu0
    %v198 = vadd.f32 0.0, %v197
    %199 = vdwg.mxu0
    %v200 = vadd.f32 %v162, %v195
    %v201 = vadd.f32 %v165, %v198
    %v202 = vld [vmem:[%s4] sm:$0x1]
    %v204 = vperm.slane %v202, 0
    %v206 = vadd.f32 %v200, %v204
    %v207 = vadd.f32 %v201, %v204
    %vm208 = vcmp.gt.f32.partialorder %v206, 0.0
    %vm209 = vcmp.gt.f32.partialorder %v207, 0.0
    %v210 = vmin.f32 %v206, 0.0
    %v211 = vmin.f32 %v207, 0.0
    %v212 = vmul.f32 %v210, 1.442695
    %v213 = vpow.pop %v212
    %v214 = vmul.f32 %v211, 1.442695
    %v215 = vpow.pop %v214
    %v216 = vsub.f32 %v213, 1.0
    %v217 = vsub.f32 %v215, 1.0
    %v218 = vsel %vm208, %v206, %v216
    %v219 = vsel %vm209, %v207, %v217
    %v222 = vrot.slane %v218, 1
    %v223 = vrot.slane %v219, 1
    %v226 = vmax.f32 %v218, %v222
    %v227 = vmax.f32 %v219, %v223
    %v228 = vrot.slane %v218, 2
    %v229 = vrot.slane %v219, 2
    %v232 = vmax.f32 %v226, %v228
    %v233 = vmax.f32 %v227, %v229
    %v236 = vrot.slane %v232, 1
    %v237 = vrot.slane %v233, 1
    %v240 = vrot.slane %v232, 2
    %v241 = vrot.slane %v233, 2
    %v244 = vsel %vm92, %v226, %v232
    %v245 = vsel %vm92, %v227, %v233
    %vm246 = vcmask 1041408
    %v247 = vsel %vm246, %v244, %v236
    %v248 = vsel %vm246, %v245, %v237
    %vm249 = vcmask 1042432
    %v250 = vsel %vm249, %v247, %v240
    %v251 = vsel %vm249, %v248, %v241
    %vm252 = vcmask 257024
    %253 = vst.msk [vmem:[#allocation10] sm:$0xf] %vm252, %v250
    %254 = vst.msk [vmem:[#allocation10 + $0x4] sm:$0xf] %vm252, %v251
    // Predicated region
    $region38: #{tpu_custom_call.1} parent=1 // pred_check
      _
    $region39: #{tpu_custom_call.1} parent=1 // pred_check_branch
      %256 = sbr.rel (0) target = $region41
    $region40: #{tpu_custom_call.1} parent=1 // pred_region
      %258 = vsyncadd [#allocation4], 0
      %s259 = sshll.u32 [#allocation10], 4
      %s260 = int_to_ptr.vmem [resolvable:$true] %s259
      %s261 = sshll.u32 %s5, 4
      %s262 = int_to_ptr.hbm [resolvable:$true] %s261
      %267 = dma.vmem_to_hbm [thread:$0]  %s260, 128, %s262, [#allocation4], 64, 64, 4
    $region41: #{tpu_custom_call.1} parent=1 // pred_fallthru
      _
    // Predicated region
    $region42: #{tpu_custom_call.1} parent=1 // pred_check
      _
    $region43: #{tpu_custom_call.1} parent=1 // pred_check_branch
      %269 = sbr.rel (0) target = $region45
    $region44: #{tpu_custom_call.1} parent=1 // pred_region
      %271 = dma.done [#allocation4], 128
    $region45: #{tpu_custom_call.1} parent=1 // pred_fallthru
      _
    %272 = vsyncpa [#allocation3], 1
    %273 = vsyncpa [#allocation6], 1
    %274 = vsyncpa [#allocation9], 1
    %275 = vsyncpa [#allocation4], 1

</llo_original>
